<compile_context>
chip_gen: v7x
topology: tpu7x:2x2x1
jax: 0.10.0
libtpu: 0.0.40
codegen_flags: <defaults>
</compile_context>

<pallas_src>
import jax
import jax.numpy as jnp
from jax.experimental import pallas as pl
from jax.experimental.pallas import tpu as pltpu

_LANE = 128
_SUBLANE = 8
_VMEM_BUDGET = 24 * 1024 * 1024   # double-buffered input streams
_VMEM_LIMIT = 40 * 1024 * 1024    # safe on v5e/v6e (128 MiB) and v7x (64 MiB)

_PACKED_OK = None                 # tri-state cache for the packed-path compile


def _round_up(x, m):
    return ((x + m - 1) // m) * m


# --------------------------------------------------------------------------
# Kernels: emit per-block column sums of the selected (target-class) log-probs.
# Weights / denominators / final divide are applied JAX-side on the tiny
# per-block partials, so one kernel body serves both weight modes.
# --------------------------------------------------------------------------
def _colsum_kernel(iota_ref, pred_ref, tgt_ref, out_ref):
    """General layout: pred (T, C), folded target (T, 1), iota (1, C)."""
    pred = pred_ref[...].astype(jnp.float32)
    onehot = iota_ref[...] == tgt_ref[...]            # (1,C) vs (T,1) -> (T,C)
    # Select (never multiply) so garbage rows of a partial block cannot
    # propagate NaN/Inf; padded/masked rows carry target -1 -> never selected.
    col = jnp.sum(jnp.where(onehot, pred, 0.0), axis=0, keepdims=True)
    out_ref[...] = col[None]                          # (1, 1, C)


def _colsum_kernel_packed(lane_ref, expand_ref, pred_ref, sel_ref, out_ref):
    """Packed layout: pred (T, 128) holds P=128//C rows per group; sel (T, P)
    holds the selected lane index per packed row (-1 if masked/padded)."""
    pred = pred_ref[...].astype(jnp.float32)
    # Expand sel to lanes on the MXU:  expanded[g, l] = sel[g, l // C].
    expanded = jnp.dot(sel_ref[...], expand_ref[...],
                       preferred_element_type=jnp.float32)      # (T, 128)
    onehot = expanded == lane_ref[...]                           # vs (1, 128)
    col = jnp.sum(jnp.where(onehot, pred, 0.0), axis=0, keepdims=True)
    out_ref[...] = col[None]                          # (1, 1, 128)


# --------------------------------------------------------------------------
# Tiling helpers
# --------------------------------------------------------------------------
def _tile_and_grid(n_rows, vmem_bytes_per_row, tile_rows):
    """Pick the largest row tile whose double-buffered streams fit the budget
    (no artificial row cap -> big per-step HBM transfers amortize the ~0.35us
    per-grid-step overhead)."""
    if tile_rows is None:
        tile_rows = _VMEM_BUDGET // (2 * vmem_bytes_per_row)
    tile_rows = max(_SUBLANE, (int(tile_rows) // _SUBLANE) * _SUBLANE)
    if tile_rows >= n_rows:
        return n_rows, 1                      # single block == full array dims
    return tile_rows, pl.cdiv(n_rows, tile_rows)


def _compiler_params():
    return pltpu.CompilerParams(
        dimension_semantics=("parallel",),    # per-block partials -> megacore
        vmem_limit_bytes=_VMEM_LIMIT,
    )


# --------------------------------------------------------------------------
# Drivers: return (C,) f32 per-class sums of pred[i, target[i]] over valid rows
# --------------------------------------------------------------------------
def _class_sums_general(pred, tgt_folded, tile_rows):
    N, C = pred.shape
    lane_c = _round_up(max(C, _LANE), _LANE)              # lane-padded pred row
    vmem_row = (lane_c + _LANE) * 4                       # pred + (T,1) target
    tile, num_tiles = _tile_and_grid(N, vmem_row, tile_rows)

    rows_padded = num_tiles * tile
    tgt2 = jnp.pad(tgt_folded, (0, rows_padded - N),
                   constant_values=-1).reshape(rows_padded, 1)
    iota = jnp.arange(C, dtype=jnp.int32).reshape(1, C)

    out = pl.pallas_call(
        _colsum_kernel,
        out_shape=jax.ShapeDtypeStruct((num_tiles, 1, C), jnp.float32),
        grid=(num_tiles,),
        in_specs=[
            pl.BlockSpec((1, C), lambda i: (0, 0)),            # resident iota
            pl.BlockSpec((tile, C), lambda i: (i, 0)),         # pred tile
            pl.BlockSpec((tile, 1), lambda i: (i, 0)),         # folded target
        ],
        out_specs=pl.BlockSpec((1, 1, C), lambda i: (i, 0, 0)),
        compiler_params=_compiler_params(),
    )(iota, pred, tgt2)
    return jnp.sum(out[:, 0, :], axis=0)                       # (C,)


def _class_sums_packed(pred, tgt_folded, tile_rows):
    N, C = pred.shape
    P = _LANE // C
    G = N // P
    pred_packed = pred.reshape(G, _LANE)          # P consecutive rows per group

    # Selected lane index per original row: p*C + target (or -1 if masked).
    pos = jnp.arange(N, dtype=jnp.int32) % P
    sel = jnp.where(tgt_folded >= 0, pos * C + tgt_folded, -1)
    sel = sel.astype(jnp.float32).reshape(G, P)

    vmem_row = (_LANE + _LANE) * 4                # pred group + sel (lane-padded)
    tile, num_tiles = _tile_and_grid(G, vmem_row, tile_rows)
    g_padded = num_tiles * tile
    sel = jnp.pad(sel, ((0, g_padded - G), (0, 0)), constant_values=-1.0)

    lane = jnp.arange(_LANE, dtype=jnp.float32).reshape(1, _LANE)
    expand = (jnp.arange(_LANE, dtype=jnp.int32)[None, :] // C
              == jnp.arange(P, dtype=jnp.int32)[:, None]).astype(jnp.float32)

    out = pl.pallas_call(
        _colsum_kernel_packed,
        out_shape=jax.ShapeDtypeStruct((num_tiles, 1, _LANE), jnp.float32),
        grid=(num_tiles,),
        in_specs=[
            pl.BlockSpec((1, _LANE), lambda i: (0, 0)),        # resident lane iota
            pl.BlockSpec((P, _LANE), lambda i: (0, 0)),        # resident expander
            pl.BlockSpec((tile, _LANE), lambda i: (i, 0)),     # packed pred
            pl.BlockSpec((tile, P), lambda i: (i, 0)),         # selected lanes
        ],
        out_specs=pl.BlockSpec((1, 1, _LANE), lambda i: (i, 0, 0)),
        compiler_params=_compiler_params(),
    )(lane, expand, pred_packed, sel)
    lane_sums = jnp.sum(out[:, 0, :], axis=0)                  # (128,)
    return jnp.sum(lane_sums.reshape(P, C), axis=0)            # (C,)


def _selected_class_sums(pred, tgt_folded, tile_rows=None):
    global _PACKED_OK
    N, C = pred.shape
    pack_ok = (2 <= C < _LANE) and (_LANE % C == 0) and (N % (_LANE // C) == 0)
    if pack_ok and _PACKED_OK is not False:
        try:
            res = jax.block_until_ready(
                _class_sums_packed(pred, tgt_folded, tile_rows))
            _PACKED_OK = True
            return res
        except Exception:
            # Small-K MXU matmul not supported by this toolchain -> general path.
            _PACKED_OK = False
    return _class_sums_general(pred, tgt_folded, tile_rows)


# --------------------------------------------------------------------------
# Public wrapper (== MaskedNLLLoss.forward)
# --------------------------------------------------------------------------
def masked_nll_loss(pred, target, mask, weight=None, *, tile_rows=None):
    """pred: (N, C) log-probs, target: (N,) int, mask: (batch, seq_len) 0/1."""
    N, C = pred.shape
    mask_f = mask.reshape(-1).astype(jnp.float32)
    # NOTE: assumes a 0/1 mask (how this module is used).
    # TODO(synk): stream per-row mask scales for fractional masks.
    valid = mask_f != 0
    tgt_folded = jnp.where(valid, target.astype(jnp.int32), -1)

    class_sums = _selected_class_sums(pred, tgt_folded, tile_rows)  # (C,) f32

    if weight is None:
        num = -jnp.sum(class_sums)
        den = jnp.sum(mask_f)
    else:
        w = weight.astype(jnp.float32)           # keep weights in f32 (PyTorch)
        num = -jnp.sum(class_sums * w)
        den = jnp.sum(w[target] * mask_f)
    return (num / den).astype(pred.dtype)


# --------------------------------------------------------------------------
if __name__ == "__main__":
    key = jax.random.PRNGKey(0)
    ks = jax.random.split(key, 12)

    def reference(pred, target, mask, weight=None):
        N = pred.shape[0]
        mask_f = mask.reshape(-1).astype(jnp.float32)
        lp = pred.astype(jnp.float32)[jnp.arange(N), target]
        if weight is None:
            return -jnp.sum(lp * mask_f) / jnp.sum(mask_f)
        w = weight.astype(jnp.float32)
        return -jnp.sum(w[target] * lp * mask_f) / jnp.sum(w[target] * mask_f)

    # Case 1: packed path (C=32 divides 128, P=4), weight=None, single block.
    b, s, C = 2, 8, 32
    N = b * s
    pred = jax.nn.log_softmax(jax.random.normal(ks[0], (N, C), jnp.float32), -1)
    tgt = jax.random.randint(ks[1], (N,), 0, C, dtype=jnp.int32)
    msk = (jax.random.uniform(ks[2], (b, s)) > 0.3).astype(jnp.float32)
    out = jax.block_until_ready(masked_nll_loss(pred, tgt, msk))
    ref = reference(pred, tgt, msk)
    assert jnp.allclose(out, ref, atol=1e-5, rtol=1e-5), (out, ref)

    # Case 2: general path (C=7), class weights, multi-block grid with a
    # partial (unpadded) last pred block.
    b, s, C = 4, 100, 7
    N = b * s
    pred = jax.nn.log_softmax(jax.random.normal(ks[3], (N, C), jnp.float32), -1)
    tgt = jax.random.randint(ks[4], (N,), 0, C, dtype=jnp.int32)
    msk = (jax.random.uniform(ks[5], (b, s)) > 0.4).astype(jnp.float32)
    w = jax.random.uniform(ks[6], (C,), minval=0.5, maxval=1.5, dtype=jnp.float32)
    out = jax.block_until_ready(masked_nll_loss(pred, tgt, msk, w, tile_rows=64))
    ref = reference(pred, tgt, msk, w)
    assert jnp.allclose(out, ref, atol=1e-5, rtol=1e-4), (out, ref)

    # Case 3: packed path (C=16, P=8), class weights, multi-block grid with a
    # partial last packed block (exercises the -1 padded-selection gating).
    b, s, C = 3, 40, 16
    N = b * s
    pred = jax.nn.log_softmax(jax.random.normal(ks[7], (N, C), jnp.float32), -1)
    tgt = jax.random.randint(ks[8], (N,), 0, C, dtype=jnp.int32)
    msk = (jax.random.uniform(ks[9], (b, s)) > 0.5).astype(jnp.float32)
    w = jax.random.uniform(ks[10], (C,), minval=0.5, maxval=1.5, dtype=jnp.float32)
    out = jax.block_until_ready(masked_nll_loss(pred, tgt, msk, w, tile_rows=8))
    ref = reference(pred, tgt, msk, w)
    assert jnp.allclose(out, ref, atol=1e-5, rtol=1e-4), (out, ref)

    # Case 4: general path, no weight, C=9 (does not divide 128).
    b, s, C = 2, 24, 9
    N = b * s
    pred = jax.nn.log_softmax(jax.random.normal(ks[11], (N, C), jnp.float32), -1)
    tgt = jax.random.randint(ks[1], (N,), 0, C, dtype=jnp.int32)
    msk = (jax.random.uniform(ks[2], (b, s)) > 0.3).astype(jnp.float32)
    out = jax.block_until_ready(masked_nll_loss(pred, tgt, msk))
    ref = reference(pred, tgt, msk)
    assert jnp.allclose(out, ref, atol=1e-5, rtol=1e-5), (out, ref)

    print("KERNEL_OK")
</pallas_src>

<mosaic_0001>
module attributes {stable_mosaic.version = 11 : i64} {
  func.func @_colsum_kernel_packed(%arg0: i32, %arg1: memref<1x128xf32, #tpu.memory_space<vmem>>, %arg2: memref<4x128xf32, #tpu.memory_space<vmem>>, %arg3: memref<4x128xf32, #tpu.memory_space<vmem>>, %arg4: memref<4x4xf32, #tpu.memory_space<vmem>>, %arg5: memref<1x1x128xf32, #tpu.memory_space<vmem>>) attributes {dimension_semantics = [#tpu.dimension_semantics<parallel>], iteration_bounds = array<i64: 1>, scalar_prefetch = 0 : i64, scratch_operands = 0 : i64, tpu.core_type = #tpu.core_type<tc>, window_params = [{pipeline_mode = #tpu.pipeline_mode<synchronous>, transform_indices = @transform_0, window_bounds = array<i64: 1, 128>}, {pipeline_mode = #tpu.pipeline_mode<synchronous>, transform_indices = @transform_1, window_bounds = array<i64: 4, 128>}, {transform_indices = @transform_2, window_bounds = array<i64: 4, 128>}, {transform_indices = @transform_3, window_bounds = array<i64: 4, 4>}, {transform_indices = @transform_4, window_bounds = array<i64: 1, 1, 128>}]} {
    %c0 = arith.constant 0 : index
    %c0_0 = arith.constant 0 : index
    %0 = vector.load %arg3[%c0, %c0_0] : memref<4x128xf32, #tpu.memory_space<vmem>>, vector<4x128xf32>
    %c0_1 = arith.constant 0 : index
    %c0_2 = arith.constant 0 : index
    %1 = vector.load %arg4[%c0_1, %c0_2] : memref<4x4xf32, #tpu.memory_space<vmem>>, vector<4x4xf32>
    %c0_3 = arith.constant 0 : index
    %c0_4 = arith.constant 0 : index
    %2 = vector.load %arg2[%c0_3, %c0_4] : memref<4x128xf32, #tpu.memory_space<vmem>>, vector<4x128xf32>
    %cst = arith.constant dense<0.000000e+00> : vector<4x128xf32>
    %3 = tpu.matmul %1, %2, %cst {dimension_numbers = #tpu.dot_dimension_numbers<[1], [0], [0], [1], [0, 0, 1, 1], [], []>} : vector<4x4xf32>, vector<4x128xf32>, vector<4x128xf32> -> vector<4x128xf32>
    %c0_5 = arith.constant 0 : index
    %c0_6 = arith.constant 0 : index
    %4 = vector.load %arg1[%c0_5, %c0_6] : memref<1x128xf32, #tpu.memory_space<vmem>>, vector<1x128xf32>
    %5 = vector.broadcast %4 : vector<1x128xf32> to vector<4x128xf32>
    %6 = arith.cmpf oeq, %3, %5 : vector<4x128xf32>
    %cst_7 = arith.constant 0.000000e+00 : f32
    %7 = vector.broadcast %cst_7 : f32 to vector<4x128xf32>
    %8 = arith.select %6, %0, %7 : vector<4x128xi1>, vector<4x128xf32>
    %cst_8 = arith.constant dense<0.000000e+00> : vector<128xf32>
    %9 = vector.multi_reduction <add>, %8, %cst_8 [0] : vector<4x128xf32> to vector<128xf32>
    %10 = vector.shape_cast %9 : vector<128xf32> to vector<1x128xf32>
    %11 = vector.shape_cast %10 : vector<1x128xf32> to vector<1x1x128xf32>
    %c0_9 = arith.constant 0 : index
    %c0_10 = arith.constant 0 : index
    %c0_11 = arith.constant 0 : index
    %12 = vector.load %arg5[%c0_9, %c0_10, %c0_11] : memref<1x1x128xf32, #tpu.memory_space<vmem>>, vector<1x1x128xf32>
    tpu.vector_store %arg5[%c0_9, %c0_10, %c0_11], %11 {strides = array<i32>} : memref<1x1x128xf32, #tpu.memory_space<vmem>>, vector<1x1x128xf32>,
    return
  }
  func.func @transform_0(%arg0: i32) -> (i32, i32) {
    %c0_i32 = arith.constant 0 : i32
    %c0_i32_0 = arith.constant 0 : i32
    %c0_i32_1 = arith.constant 0 : i32
    return %c0_i32, %c0_i32_0 : i32, i32
  }
  func.func @transform_1(%arg0: i32) -> (i32, i32) {
    %c0_i32 = arith.constant 0 : i32
    %c0_i32_0 = arith.constant 0 : i32
    %c0_i32_1 = arith.constant 0 : i32
    return %c0_i32, %c0_i32_0 : i32, i32
  }
  func.func @transform_2(%arg0: i32) -> (i32, i32) {
    %c0_i32 = arith.constant 0 : i32
    %c0_i32_0 = arith.constant 0 : i32
    return %arg0, %c0_i32 : i32, i32
  }
  func.func @transform_3(%arg0: i32) -> (i32, i32) {
    %c0_i32 = arith.constant 0 : i32
    %c0_i32_0 = arith.constant 0 : i32
    return %arg0, %c0_i32 : i32, i32
  }
  func.func @transform_4(%arg0: i32) -> (i32, i32, i32) {
    %c0_i32 = arith.constant 0 : i32
    %c0_i32_0 = arith.constant 0 : i32
    %c0_i32_1 = arith.constant 0 : i32
    return %arg0, %c0_i32, %c0_i32_0 : i32, i32, i32
  }
}

module attributes {stable_mosaic.version = 11 : i64} {
  func.func @_colsum_kernel(%arg0: i32, %arg1: memref<1x32xi32, #tpu.memory_space<vmem>>, %arg2: memref<16x32xf32, #tpu.memory_space<vmem>>, %arg3: memref<16x1xi32, #tpu.memory_space<vmem>>, %arg4: memref<1x1x32xf32, #tpu.memory_space<vmem>>) attributes {dimension_semantics = [#tpu.dimension_semantics<parallel>], iteration_bounds = array<i64: 1>, scalar_prefetch = 0 : i64, scratch_operands = 0 : i64, tpu.core_type = #tpu.core_type<tc>, window_params = [{pipeline_mode = #tpu.pipeline_mode<synchronous>, transform_indices = @transform_0, window_bounds = array<i64: 1, 32>}, {transform_indices = @transform_1, window_bounds = array<i64: 16, 32>}, {transform_indices = @transform_2, window_bounds = array<i64: 16, 1>}, {transform_indices = @transform_3, window_bounds = array<i64: 1, 1, 32>}]} {
    %c0 = arith.constant 0 : index
    %c0_0 = arith.constant 0 : index
    %0 = vector.load %arg2[%c0, %c0_0] : memref<16x32xf32, #tpu.memory_space<vmem>>, vector<16x32xf32>
    %c0_1 = arith.constant 0 : index
    %c0_2 = arith.constant 0 : index
    %1 = vector.load %arg1[%c0_1, %c0_2] : memref<1x32xi32, #tpu.memory_space<vmem>>, vector<1x32xi32>
    %c0_3 = arith.constant 0 : index
    %c0_4 = arith.constant 0 : index
    %2 = vector.load %arg3[%c0_3, %c0_4] : memref<16x1xi32, #tpu.memory_space<vmem>>, vector<16x1xi32>
    %3 = vector.broadcast %1 : vector<1x32xi32> to vector<16x32xi32>
    %4 = vector.broadcast %2 : vector<16x1xi32> to vector<16x32xi32>
    %5 = arith.cmpi eq, %3, %4 : vector<16x32xi32>
    %cst = arith.constant 0.000000e+00 : f32
    %6 = vector.broadcast %cst : f32 to vector<16x32xf32>
    %7 = arith.select %5, %0, %6 : vector<16x32xi1>, vector<16x32xf32>
    %cst_5 = arith.constant dense<0.000000e+00> : vector<32xf32>
    %8 = vector.multi_reduction <add>, %7, %cst_5 [0] : vector<16x32xf32> to vector<32xf32>
    %9 = vector.shape_cast %8 : vector<32xf32> to vector<1x32xf32>
    %10 = vector.shape_cast %9 : vector<1x32xf32> to vector<1x1x32xf32>
    %c0_6 = arith.constant 0 : index
    %c0_7 = arith.constant 0 : index
    %c0_8 = arith.constant 0 : index
    %11 = vector.load %arg4[%c0_6, %c0_7, %c0_8] : memref<1x1x32xf32, #tpu.memory_space<vmem>>, vector<1x1x32xf32>
    tpu.vector_store %arg4[%c0_6, %c0_7, %c0_8], %10 {strides = array<i32>} : memref<1x1x32xf32, #tpu.memory_space<vmem>>, vector<1x1x32xf32>,
    return
  }
  func.func @transform_0(%arg0: i32) -> (i32, i32) {
    %c0_i32 = arith.constant 0 : i32
    %c0_i32_0 = arith.constant 0 : i32
    %c0_i32_1 = arith.constant 0 : i32
    return %c0_i32, %c0_i32_0 : i32, i32
  }
  func.func @transform_1(%arg0: i32) -> (i32, i32) {
    %c0_i32 = arith.constant 0 : i32
    %c0_i32_0 = arith.constant 0 : i32
    return %arg0, %c0_i32 : i32, i32
  }
  func.func @transform_2(%arg0: i32) -> (i32, i32) {
    %c0_i32 = arith.constant 0 : i32
    %c0_i32_0 = arith.constant 0 : i32
    return %arg0, %c0_i32 : i32, i32
  }
  func.func @transform_3(%arg0: i32) -> (i32, i32, i32) {
    %c0_i32 = arith.constant 0 : i32
    %c0_i32_0 = arith.constant 0 : i32
    %c0_i32_1 = arith.constant 0 : i32
    return %arg0, %c0_i32, %c0_i32_0 : i32, i32, i32
  }
}

</mosaic_0001>

<llo_original>
// kernel: tpu_custom_call.1
$region0: #{tpu_custom_call.1}
  #allocation0 [shape = 'u32[]', space=smem, size = 0x4, offset = 0x4, fixed_abs, tag = 'smem constant byte address 0x4 - core index']
  #allocation1 [shape = 'u32[144,128]{1,0:T(1,128)}', space=vmem, size = 0x12000, scoped, tag = 'internal scratch']
  %s0 = inlined_call_operand.hbm [shape: f32[1,128], index: 0, kind: input, shape index: {}]
  %s1 = inlined_call_operand.hbm [shape: f32[4,128], index: 1, kind: input, shape index: {}]
  %s2 = inlined_call_operand.vmem [shape: f32[4,128], index: 2, kind: input, shape index: {}]
  %s3 = inlined_call_operand.vmem [shape: f32[4,4], index: 3, kind: input, shape index: {}]
  %s4 = inlined_call_operand.hbm [shape: f32[1,1,128], index: 4, kind: output, shape index: {}]
  %s5 = sld [smem:[#allocation0]]
  $region34: #{tpu_custom_call.1} parent=0
    _
  %s7 = ssub.s32 1, %s5
  %s8 = scalar_select 0, %s7, %s5
  $region1: #{tpu_custom_call.1} parent=0
    #allocation2 [shape = 'u8[512]{0}', space=vmem, size = 0x400, scoped, tag = 'input window, operand 0, single buffered']
    #allocation3 [shape = 's32[1]{0}', space=sflag, size = 0x4, scoped, tag = 'scoped memory for tpu_custom_call.1']
    #allocation4 [shape = 's32[1]{0}', space=sflag, size = 0x4, scoped, tag = 'scoped memory for tpu_custom_call.1']
    #allocation5 [shape = 'u8[2048]{0}', space=vmem, size = 0x800, scoped, tag = 'input window, operand 1, single buffered']
    #allocation6 [shape = 's32[1]{0}', space=sflag, size = 0x4, scoped, tag = 'scoped memory for tpu_custom_call.1']
    #allocation7 [shape = 'u8[512]{0}', space=vmem, size = 0x400, scoped, tag = 'output window, operand 0, single buffered']
    %9 = vsyncpa [#allocation3], 0
    %10 = vsyncpa [#allocation6], 0
    %11 = vsyncpa [#allocation4], 0
    // Predicated region
    $region2: #{tpu_custom_call.1} parent=1 // pred_check
      _
    $region3: #{tpu_custom_call.1} parent=1 // pred_check_branch
      %13 = sbr.rel (0) target = $region5
    $region4: #{tpu_custom_call.1} parent=1 // pred_region
      %s15 = ssub.s32 16, 16
      %16 = vsyncadd [#allocation3], %s15
      %s18 = sshll.u32 [#allocation2], 4
      %s19 = int_to_ptr.vmem [resolvable:$true] %s18
      %21 = dma.hbm_to_vmem [thread:$0]  %s0, 16, %s19, [#allocation3]
    $region5: #{tpu_custom_call.1} parent=1 // pred_fallthru
      _
    // Predicated region
    $region6: #{tpu_custom_call.1} parent=1 // pred_check
      _
    $region7: #{tpu_custom_call.1} parent=1 // pred_check_branch
      %23 = sbr.rel (0) target = $region9
    $region8: #{tpu_custom_call.1} parent=1 // pred_region
      %s25 = ssub.s32 64, 64
      %26 = vsyncadd [#allocation6], %s25
      %s28 = sshll.u32 [#allocation5], 4
      %s29 = int_to_ptr.vmem [resolvable:$true] %s28
      %31 = dma.hbm_to_vmem [thread:$0]  %s1, 64, %s29, [#allocation6]
    $region9: #{tpu_custom_call.1} parent=1 // pred_fallthru
      _
    // Predicated region
    $region10: #{tpu_custom_call.1} parent=1 // pred_check
      _
    $region11: #{tpu_custom_call.1} parent=1 // pred_check_branch
      %33 = sbr.rel (0) target = $region13
    $region12: #{tpu_custom_call.1} parent=1 // pred_region
      _
    $region13: #{tpu_custom_call.1} parent=1 // pred_fallthru
      _
    // Predicated region
    $region14: #{tpu_custom_call.1} parent=1 // pred_check
      _
    $region15: #{tpu_custom_call.1} parent=1 // pred_check_branch
      %35 = sbr.rel (0) target = $region17
    $region16: #{tpu_custom_call.1} parent=1 // pred_region
      _
    $region17: #{tpu_custom_call.1} parent=1 // pred_fallthru
      _
    // Predicated region
    $region18: #{tpu_custom_call.1} parent=1 // pred_check
      _
    $region19: #{tpu_custom_call.1} parent=1 // pred_check_branch
      %37 = sbr.rel (0) target = $region21
    $region20: #{tpu_custom_call.1} parent=1 // pred_region
      %38 = dma.done [#allocation3], 16
    $region21: #{tpu_custom_call.1} parent=1 // pred_fallthru
      _
    // Predicated region
    $region22: #{tpu_custom_call.1} parent=1 // pred_check
      _
    $region23: #{tpu_custom_call.1} parent=1 // pred_check_branch
      %40 = sbr.rel (0) target = $region25
    $region24: #{tpu_custom_call.1} parent=1 // pred_region
      %41 = dma.done [#allocation6], 64
    $region25: #{tpu_custom_call.1} parent=1 // pred_fallthru
      _
    %v42 = vld [vmem:[%s2] sm:$0xf]
    %v43 = vld [vmem:[%s3] sm:$0xf]
    %v44 = vld [vmem:[#allocation5] sm:$0xf]
    %vm45 = vcmask 31744
    %v47 = vsel %vm45, %v43, 0
    %vm49 = vcmask 1043456
    %v51 = vsel %vm49, %v44, 0
    %53 = vmatprep.subr.mxu0 0.0
    %54 = vmatpush1.msra.mxu0 %v51
    %55 = vmatprep.subr.mxu0 0.0
    %56 = vmatpush1.msra.mxu0 0.0
    %57 = vmatprep.subr.mxu0 0.0
    %58 = vmatpush1.msra.mxu0 0.0
    %59 = vmatprep.subr.mxu0 0.0
    %60 = vmatpush1.msra.mxu0 0.0
    %61 = vmatprep.subr.mxu0 0.0
    %62 = vmatpush1.msra.mxu0 0.0
    %63 = vmatprep.subr.mxu0 0.0
    %64 = vmatpush1.msra.mxu0 0.0
    %65 = vmatprep.subr.mxu0 0.0
    %66 = vmatpush1.msra.mxu0 0.0
    %67 = vmatprep.subr.mxu0 0.0
    %68 = vmatpush1.msra.mxu0 0.0
    %69 = vmatprep.subr.mxu0 0.0
    %70 = vmatpush1.msra.mxu0 0.0
    %71 = vmatprep.subr.mxu0 0.0
    %72 = vmatpush1.msra.mxu0 0.0
    %73 = vmatprep.subr.mxu0 0.0
    %74 = vmatpush1.msra.mxu0 0.0
    %75 = vmatprep.subr.mxu0 0.0
    %76 = vmatpush1.msra.mxu0 0.0
    %77 = vmatprep.subr.mxu0 0.0
    %78 = vmatpush1.msra.mxu0 0.0
    %79 = vmatprep.subr.mxu0 0.0
    %80 = vmatpush1.msra.mxu0 0.0
    %81 = vmatprep.subr.mxu0 0.0
    %82 = vmatpush1.msra.mxu0 0.0
    %83 = vmatprep.subr.mxu0 0.0
    %84 = vmatpush1.msra.mxu0 0.0
    %85 = vmatprep.subr.mxu0 0.0
    %86 = vmatpush1.msra.mxu0 0.0
    %87 = vmatprep.subr.mxu0 0.0
    %88 = vmatpush1.msra.mxu0 0.0
    %89 = vmatprep.subr.mxu0 0.0
    %90 = vmatpush1.msra.mxu0 0.0
    %91 = vmatprep.subr.mxu0 0.0
    %92 = vmatpush1.msra.mxu0 0.0
    %93 = vmatprep.subr.mxu0 0.0
    %94 = vmatpush1.msra.mxu0 0.0
    %95 = vmatprep.subr.mxu0 0.0
    %96 = vmatpush1.msra.mxu0 0.0
    %97 = vmatprep.subr.mxu0 0.0
    %98 = vmatpush1.msra.mxu0 0.0
    %99 = vmatprep.subr.mxu0 0.0
    %100 = vmatpush1.msra.mxu0 0.0
    %101 = vmatprep.subr.mxu0 0.0
    %102 = vmatpush1.msra.mxu0 0.0
    %103 = vmatprep.subr.mxu0 0.0
    %104 = vmatpush1.msra.mxu0 0.0
    %105 = vmatprep.subr.mxu0 0.0
    %106 = vmatpush1.msra.mxu0 0.0
    %107 = vmatprep.subr.mxu0 0.0
    %108 = vmatpush1.msra.mxu0 0.0
    %109 = vmatprep.subr.mxu0 0.0
    %110 = vmatpush1.msra.mxu0 0.0
    %111 = vmatprep.subr.mxu0 0.0
    %112 = vmatpush1.msra.mxu0 0.0
    %113 = vmatprep.subr.mxu0 0.0
    %114 = vmatpush1.msra.mxu0 0.0
    %115 = vmatprep.subr.mxu0 0.0
    %116 = vmatpush1.msra.mxu0 0.0
    %117 = vmatprep.mubr.f32.mxu0 0.0
    %118 = vmatmul.mubr.f32.gmra.mrb[0].mxu0 %v47
    %v119 = vpop.f32.mrb[0].mxu0
    %v120 = vadd.f32 0.0, %v119
    %v121 = vpop.f32.mrb[0].mxu0
    %122 = vdwg.mxu0
    %v123 = vld [vmem:[#allocation2] sm:$0x1]
    %v125 = vlaneseq
    %v126 = vshrl.u32 %v125, 7
    %v127 = vsub.s32 0, %v126
    %v128 = vrot.slane %v123, %v127
    %vm130 = vcmp.eq.f32.partialorder %v120, %v128
    %v131 = vsel %vm130, %v42, 0.0
    %v132 = vsel %vm49, %v131, 0.0
    %v133 = vrot.slane %v132, 4
    %v134 = vadd.f32 %v132, %v133
    %v135 = vrot.slane %v134, 2
    %v136 = vadd.f32 %v134, %v135
    %v137 = vrot.slane %v136, 1
    %v138 = vadd.f32 %v136, %v137
    %139 = vst [vmem:[#allocation7] sm:$0x1] %v138
    // Predicated region
    $region26: #{tpu_custom_call.1} parent=1 // pred_check
      _
    $region27: #{tpu_custom_call.1} parent=1 // pred_check_branch
      %141 = sbr.rel (0) target = $region29
    $region28: #{tpu_custom_call.1} parent=1 // pred_region
      %s143 = ssub.s32 16, 16
      %144 = vsyncadd [#allocation4], %s143
      %s146 = sshll.u32 [#allocation7], 4
      %s147 = int_to_ptr.vmem [resolvable:$true] %s146
      %149 = dma.vmem_to_hbm [thread:$0]  %s147, 16, %s4, [#allocation4]
    $region29: #{tpu_custom_call.1} parent=1 // pred_fallthru
      _
    // Predicated region
    $region30: #{tpu_custom_call.1} parent=1 // pred_check
      _
    $region31: #{tpu_custom_call.1} parent=1 // pred_check_branch
      %151 = sbr.rel (0) target = $region33
    $region32: #{tpu_custom_call.1} parent=1 // pred_region
      %152 = dma.done [#allocation4], 16
    $region33: #{tpu_custom_call.1} parent=1 // pred_fallthru
      _
    %153 = vsyncpa [#allocation3], 1
    %154 = vsyncpa [#allocation6], 1
    %155 = vsyncpa [#allocation4], 1

// kernel: tpu_custom_call.1
$region0: #{tpu_custom_call.1}
  #allocation0 [shape = 'u32[]', space=smem, size = 0x4, offset = 0x4, fixed_abs, tag = 'smem constant byte address 0x4 - core index']
  #allocation1 [shape = 'u32[144,128]{1,0:T(1,128)}', space=vmem, size = 0x12000, scoped, tag = 'internal scratch']
  %s0 = inlined_call_operand.vmem [shape: s32[1,32], index: 0, kind: input, shape index: {}]
  %s1 = inlined_call_operand.vmem [shape: f32[16,32], index: 1, kind: input, shape index: {}]
  %s2 = inlined_call_operand.vmem [shape: s32[16,1], index: 2, kind: input, shape index: {}]
  %s3 = inlined_call_operand.hbm [shape: f32[1,1,32], index: 3, kind: output, shape index: {}]
  %s4 = sld [smem:[#allocation0]]
  $region22: #{tpu_custom_call.1} parent=0
    _
  %s6 = ssub.s32 1, %s4
  %s7 = scalar_select 0, %s6, %s4
  $region1: #{tpu_custom_call.1} parent=0
    #allocation2 [shape = 'u8[512]{0}', space=vmem, size = 0x400, scoped, tag = 'output window, operand 0, single buffered']
    #allocation3 [shape = 's32[1]{0}', space=sflag, size = 0x4, scoped, tag = 'scoped memory for tpu_custom_call.1']
    %8 = vsyncpa [#allocation3], 0
    // Predicated region
    $region2: #{tpu_custom_call.1} parent=1 // pred_check
      _
    $region3: #{tpu_custom_call.1} parent=1 // pred_check_branch
      %10 = sbr.rel (0) target = $region5
    $region4: #{tpu_custom_call.1} parent=1 // pred_region
      _
    $region5: #{tpu_custom_call.1} parent=1 // pred_fallthru
      _
    // Predicated region
    $region6: #{tpu_custom_call.1} parent=1 // pred_check
      _
    $region7: #{tpu_custom_call.1} parent=1 // pred_check_branch
      %12 = sbr.rel (0) target = $region9
    $region8: #{tpu_custom_call.1} parent=1 // pred_region
      _
    $region9: #{tpu_custom_call.1} parent=1 // pred_fallthru
      _
    // Predicated region
    $region10: #{tpu_custom_call.1} parent=1 // pred_check
      _
    $region11: #{tpu_custom_call.1} parent=1 // pred_check_branch
      %14 = sbr.rel (0) target = $region13
    $region12: #{tpu_custom_call.1} parent=1 // pred_region
      _
    $region13: #{tpu_custom_call.1} parent=1 // pred_fallthru
      _
    %v15 = vld [vmem:[%s1] sm:$0xff]
    %v16 = vld [vmem:[%s1 + $0x8] sm:$0xff]
    %v17 = vld [vmem:[%s0] sm:$0x1]
    %v18 = vld [vmem:[%s2] sm:$0xff]
    %v19 = vld [vmem:[%s2 + $0x8] sm:$0xff]
    %v20 = vlaneseq
    %v21 = vshrl.u32 %v20, 7
    %v22 = vsub.s32 0, %v21
    %v23 = vrot.slane %v17, %v22
    %24 = vset.pattern.permute.xlu0 0
    %25 = vperm.xlu0 %24, %v18
    %v26 = vpop.permute.xlu0 %25
    %27 = vset.pattern.permute.xlu0 0
    %28 = vperm.xlu0 %27, %v19
    %v29 = vpop.permute.xlu0 %28
    %vm30 = vcmp.eq.s32.totalorder %v23, %v26
    %vm31 = vcmp.eq.s32.totalorder %v23, %v29
    %v32 = vsel %vm30, %v15, 0.0
    %v33 = vsel %vm31, %v16, 0.0
    %vm34 = vcmask 261120
    %v35 = vsel %vm34, %v32, 0.0
    %v36 = vsel %vm34, %v33, 0.0
    %v37 = vadd.f32 %v35, %v36
    %v38 = vrot.slane %v37, 4
    %v39 = vadd.f32 %v37, %v38
    %v40 = vrot.slane %v39, 2
    %v41 = vadd.f32 %v39, %v40
    %v42 = vrot.slane %v41, 1
    %v43 = vadd.f32 %v41, %v42
    %vm44 = vcmask 253952
    %45 = vst.msk [vmem:[#allocation2] sm:$0x1] %vm44, %v43
    // Predicated region
    $region14: #{tpu_custom_call.1} parent=1 // pred_check
      _
    $region15: #{tpu_custom_call.1} parent=1 // pred_check_branch
      %47 = sbr.rel (0) target = $region17
    $region16: #{tpu_custom_call.1} parent=1 // pred_region
      %s49 = ssub.s32 16, 16
      %50 = vsyncadd [#allocation3], %s49
      %s52 = sshll.u32 [#allocation2], 4
      %s53 = int_to_ptr.vmem [resolvable:$true] %s52
      %55 = dma.vmem_to_hbm [thread:$0]  %s53, 16, %s3, [#allocation3]
    $region17: #{tpu_custom_call.1} parent=1 // pred_fallthru
      _
    // Predicated region
    $region18: #{tpu_custom_call.1} parent=1 // pred_check
      _
    $region19: #{tpu_custom_call.1} parent=1 // pred_check_branch
      %57 = sbr.rel (0) target = $region21
    $region20: #{tpu_custom_call.1} parent=1 // pred_region
      %58 = dma.done [#allocation3], 16
    $region21: #{tpu_custom_call.1} parent=1 // pred_fallthru
      _
    %59 = vsyncpa [#allocation3], 1

</llo_original>
